<compile_context>
chip_gen: v7x
topology: tpu7x:2x2x1
jax: 0.10.0
libtpu: 0.0.40
codegen_flags: <defaults>
</compile_context>

<pallas_src>
import jax
import jax.numpy as jnp
from jax.experimental import pallas as pl
from jax.experimental.pallas import tpu as pltpu


def _arc_mlp_kernel(x_ref, w1_ref, b1_ref, w2_ref, b2_ref, o_ref):
    # x_ref : (tm, H)    tile of flattened features (native dtype)
    # w1_ref: (H, Hid)   lin1 weight, transposed so the kernel does x @ W1^T
    # b1_ref: (1, Hid)   lin1 bias
    # w2_ref: (1, Hid)   lin2 weight as a row vector (VPU path)
    # b2_ref: (1,)       lin2 bias, SMEM scalar
    # o_ref : (tm, 1)    per-row scalar prediction
    h_pre = jnp.dot(
        x_ref[...],
        w1_ref[...],
        preferred_element_type=jnp.float32,
        precision=jax.lax.Precision.HIGHEST,
    )
    h_act = jnp.tanh(h_pre + b1_ref[...])                    # f32 elementwise
    # lin2 (hid -> 1): elementwise multiply (VPU) + lane reduction (XLU),
    # co-issues with the MXU work instead of paying an MRF drain for 1 column.
    out = jnp.sum(h_act * w2_ref[...], axis=-1, keepdims=True) + b2_ref[0]
    o_ref[...] = out.astype(o_ref.dtype)


def _round_up(x, m):
    return ((x + m - 1) // m) * m


def _choose_row_tile(M, target):
    """Row tile: large (amortizes per-grid-step overhead) but keep >=2 grid
    steps when possible so the 'parallel' axis can shard across v7x's 2 TCs."""
    target = max(8, (target // 8) * 8)
    if M <= 8:
        return M                         # single block == full array dim
    tm = min(target, _round_up(M, 8))
    if M <= tm:                          # would collapse to one grid step
        tm = _round_up((M + 1) // 2, 8)
    return tm


def arc_predictor_wloss_forward(f, head, w1, b1, w2, b2, *, tm=2048):
    """f: (n, l, l, h), head: (n, l, l). Returns (pred, wloss), pred: (n, l, l)."""
    n, l, l2, h = f.shape
    assert l == l2, "features must be (n, l, l, h)"
    hid, h_in = w1.shape
    assert h_in == h, "lin1 weight must be (hidden_dim, features_dim)"

    M = n * l * l
    x = f.reshape(M, h)                  # free reshape, native dtype (no pad, no cast)

    itemsize = jnp.dtype(x.dtype).itemsize
    # Two double-buffered x tiles <= ~16 MiB keeps the kernel well under the
    # 32 MiB scoped-VMEM default on v7x (64 MiB physical) and is tiny for
    # v5e/v6e (128 MiB physical).
    vmem_row_cap = max(8, (16 * 1024 * 1024) // (2 * h * itemsize))
    tm_eff = _choose_row_tile(M, min(tm, vmem_row_cap))
    grid = (pl.cdiv(M, tm_eff),)         # partial last block: OOB output rows are masked

    w1t = jnp.asarray(w1).T                                  # (h, hid), VMEM-resident
    b1r = jnp.asarray(b1).reshape(1, hid)                    # (1, hid)
    w2r = jnp.asarray(w2).reshape(1, hid)                    # (1, hid) row vector
    b2s = jnp.asarray(b2, jnp.float32).reshape(1)            # (1,) SMEM scalar

    out = pl.pallas_call(
        _arc_mlp_kernel,
        out_shape=jax.ShapeDtypeStruct((M, 1), jnp.float32),
        grid=grid,
        in_specs=[
            pl.BlockSpec((tm_eff, h), lambda i: (i, 0)),     # x row tile
            pl.BlockSpec((h, hid), lambda i: (0, 0)),        # W1^T (resident)
            pl.BlockSpec((1, hid), lambda i: (0, 0)),        # b1
            pl.BlockSpec((1, hid), lambda i: (0, 0)),        # w2 row
            pl.BlockSpec(memory_space=pltpu.MemorySpace.SMEM),  # b2 scalar
        ],
        out_specs=pl.BlockSpec((tm_eff, 1), lambda i: (i, 0)),
        compiler_params=pltpu.CompilerParams(
            dimension_semantics=("parallel",)),
    )(x, w1t, b1r, w2r, b2s)

    pred = out[:, 0].reshape(n, l, l)

    # `head` is only consumed by the (unimplementable) Wasserstein-loss branch.
    wloss = None
    return pred, wloss


if __name__ == "__main__":
    key = jax.random.PRNGKey(0)
    n, l, feat, hid = 2, 8, 32, 32
    k_f, k_h, k_w1, k_b1, k_w2, k_b2 = jax.random.split(key, 6)

    f = jax.random.normal(k_f, (n, l, l, feat), dtype=jnp.float32)
    head = jax.random.normal(k_h, (n, l, l), dtype=jnp.float32)

    # Deterministic parameter init mimicking nn.Linear (uniform +/- 1/sqrt(fan_in)).
    bnd1 = float(1.0 / (feat ** 0.5))
    w1 = jax.random.uniform(k_w1, (hid, feat), minval=-bnd1, maxval=bnd1, dtype=jnp.float32)
    b1 = jax.random.uniform(k_b1, (hid,), minval=-bnd1, maxval=bnd1, dtype=jnp.float32)
    bnd2 = float(1.0 / (hid ** 0.5))
    w2 = jax.random.uniform(k_w2, (1, hid), minval=-bnd2, maxval=bnd2, dtype=jnp.float32)
    b2 = jax.random.uniform(k_b2, (1,), minval=-bnd2, maxval=bnd2, dtype=jnp.float32)

    pred, wloss = arc_predictor_wloss_forward(f, head, w1, b1, w2, b2)
    pred = jax.block_until_ready(pred)

    # Plain-JAX reference of the arc-predictor MLP (same HIGHEST matmul precision).
    x2 = f.reshape(-1, feat)
    h_ref = jnp.tanh(jnp.dot(x2, w1.T, precision=jax.lax.Precision.HIGHEST) + b1)
    ref = (jnp.dot(h_ref, w2.T, precision=jax.lax.Precision.HIGHEST) + b2).reshape(n, l, l)

    assert pred.shape == (n, l, l)
    assert jnp.allclose(pred, ref, atol=1e-5, rtol=1e-5), "kernel mismatch vs reference"

    print("KERNEL_OK")
</pallas_src>

<mosaic_0001>
module attributes {stable_mosaic.version = 11 : i64} {
  func.func @_arc_mlp_kernel(%arg0: i32, %arg1: memref<64x32xf32, #tpu.memory_space<vmem>>, %arg2: memref<32x32xf32, #tpu.memory_space<vmem>>, %arg3: memref<1x32xf32, #tpu.memory_space<vmem>>, %arg4: memref<1x32xf32, #tpu.memory_space<vmem>>, %arg5: memref<1xf32, #tpu.memory_space<smem>>, %arg6: memref<64x1xf32, #tpu.memory_space<vmem>>) attributes {dimension_semantics = [#tpu.dimension_semantics<parallel>], iteration_bounds = array<i64: 2>, scalar_prefetch = 0 : i64, scratch_operands = 0 : i64, tpu.core_type = #tpu.core_type<tc>, window_params = [{transform_indices = @transform_0, window_bounds = array<i64: 64, 32>}, {pipeline_mode = #tpu.pipeline_mode<synchronous>, transform_indices = @transform_1, window_bounds = array<i64: 32, 32>}, {pipeline_mode = #tpu.pipeline_mode<synchronous>, transform_indices = @transform_2, window_bounds = array<i64: 1, 32>}, {pipeline_mode = #tpu.pipeline_mode<synchronous>, transform_indices = @transform_3, window_bounds = array<i64: 1, 32>}, {transform_indices = @transform_4, window_bounds = array<i64: 1>}, {transform_indices = @transform_5, window_bounds = array<i64: 64, 1>}]} {
    %c0 = arith.constant 0 : index
    %c0_0 = arith.constant 0 : index
    %0 = vector.load %arg1[%c0, %c0_0] : memref<64x32xf32, #tpu.memory_space<vmem>>, vector<64x32xf32>
    %c0_1 = arith.constant 0 : index
    %c0_2 = arith.constant 0 : index
    %1 = vector.load %arg2[%c0_1, %c0_2] : memref<32x32xf32, #tpu.memory_space<vmem>>, vector<32x32xf32>
    %cst = arith.constant dense<0.000000e+00> : vector<64x32xf32>
    %2 = tpu.matmul %0, %1, %cst {dimension_numbers = #tpu.dot_dimension_numbers<[1], [0], [0], [1], [0, 0, 1, 1], [], []>, precision = #tpu.contract_precision<fp32>} : vector<64x32xf32>, vector<32x32xf32>, vector<64x32xf32> -> vector<64x32xf32>
    %c0_3 = arith.constant 0 : index
    %c0_4 = arith.constant 0 : index
    %3 = vector.load %arg3[%c0_3, %c0_4] : memref<1x32xf32, #tpu.memory_space<vmem>>, vector<1x32xf32>
    %4 = vector.broadcast %3 : vector<1x32xf32> to vector<64x32xf32>
    %5 = arith.addf %2, %4 : vector<64x32xf32>
    %6 = math.tanh %5 : vector<64x32xf32>
    %c0_5 = arith.constant 0 : index
    %c0_6 = arith.constant 0 : index
    %7 = vector.load %arg4[%c0_5, %c0_6] : memref<1x32xf32, #tpu.memory_space<vmem>>, vector<1x32xf32>
    %8 = vector.broadcast %7 : vector<1x32xf32> to vector<64x32xf32>
    %9 = arith.mulf %6, %8 : vector<64x32xf32>
    %cst_7 = arith.constant dense<0.000000e+00> : vector<64xf32>
    %10 = vector.multi_reduction <add>, %9, %cst_7 [1] : vector<64x32xf32> to vector<64xf32>
    %11 = vector.shape_cast %10 : vector<64xf32> to vector<64x1xf32>
    %c0_8 = arith.constant 0 : index
    %12 = memref.load %arg5[%c0_8] : memref<1xf32, #tpu.memory_space<smem>>
    %13 = vector.broadcast %12 : f32 to vector<64x1xf32>
    %14 = arith.addf %11, %13 : vector<64x1xf32>
    %c0_9 = arith.constant 0 : index
    %c0_10 = arith.constant 0 : index
    %15 = vector.load %arg6[%c0_9, %c0_10] : memref<64x1xf32, #tpu.memory_space<vmem>>, vector<64x1xf32>
    tpu.vector_store %arg6[%c0_9, %c0_10], %14 {strides = array<i32>} : memref<64x1xf32, #tpu.memory_space<vmem>>, vector<64x1xf32>,
    return
  }
  func.func @transform_0(%arg0: i32) -> (i32, i32) {
    %c0_i32 = arith.constant 0 : i32
    %c0_i32_0 = arith.constant 0 : i32
    return %arg0, %c0_i32 : i32, i32
  }
  func.func @transform_1(%arg0: i32) -> (i32, i32) {
    %c0_i32 = arith.constant 0 : i32
    %c0_i32_0 = arith.constant 0 : i32
    %c0_i32_1 = arith.constant 0 : i32
    return %c0_i32, %c0_i32_0 : i32, i32
  }
  func.func @transform_2(%arg0: i32) -> (i32, i32) {
    %c0_i32 = arith.constant 0 : i32
    %c0_i32_0 = arith.constant 0 : i32
    %c0_i32_1 = arith.constant 0 : i32
    return %c0_i32, %c0_i32_0 : i32, i32
  }
  func.func @transform_3(%arg0: i32) -> (i32, i32) {
    %c0_i32 = arith.constant 0 : i32
    %c0_i32_0 = arith.constant 0 : i32
    %c0_i32_1 = arith.constant 0 : i32
    return %c0_i32, %c0_i32_0 : i32, i32
  }
  func.func @transform_4(%arg0: i32) -> i32 {
    %c0_i32 = arith.constant 0 : i32
    %c0_i32_0 = arith.constant 0 : i32
    return %c0_i32 : i32
  }
  func.func @transform_5(%arg0: i32) -> (i32, i32) {
    %c0_i32 = arith.constant 0 : i32
    %c0_i32_0 = arith.constant 0 : i32
    return %arg0, %c0_i32 : i32, i32
  }
}

</mosaic_0001>

<llo_original>
// kernel: tpu_custom_call.1
$region0: #{tpu_custom_call.1}
  #allocation0 [shape = 'u32[]', space=smem, size = 0x4, offset = 0x4, fixed_abs, tag = 'smem constant byte address 0x4 - core index']
  #allocation1 [shape = 'u32[144,128]{1,0:T(1,128)}', space=vmem, size = 0x12000, scoped, tag = 'internal scratch']
  #allocation2 [shape = 'f32[1]{0:T(128)S(6)}', space=smem, size = 0x200, scoped, tag = 'scoped memory for tpu_custom_call.1']
  %s0 = inlined_call_operand.vmem [shape: f32[128,32], index: 0, kind: input, shape index: {}]
  %s1 = inlined_call_operand.vmem [shape: f32[32,32], index: 1, kind: input, shape index: {}]
  %s2 = inlined_call_operand.vmem [shape: f32[1,32], index: 2, kind: input, shape index: {}]
  %s3 = inlined_call_operand.vmem [shape: f32[1,32], index: 3, kind: input, shape index: {}]
  %s4 = inlined_call_operand.<no memory space> [shape: f32[1], index: 4, kind: input, shape index: {}]
  %s5 = inlined_call_operand.vmem [shape: f32[128,1], index: 5, kind: output, shape index: {}]
  %s6 = sld [smem:[#allocation0]]
  $region53: #{tpu_custom_call.1} parent=0
    _
  %s8 = ssub.s32 1, %s6
  %s9 = scalar_select 0, %s8, %s6
  %10 = sst [smem:[#allocation2]] %s4
  loop: start=0, step=1, limit=4
  $region2: #{tpu_custom_call.1} parent=0 // loop_pre_header
    _
  $region3: #{tpu_custom_call.1} parent=0 // loop_header
    %s12 = sphi 0, %s16
    %p13 = scmp.ge.s32.totalorder %s12, 4
    %s22 = sphi 0, %s24
    %s25 = sphi 0, %s22
    %s26 = sphi 0, %s25
    %s42 = sphi 0, %s26
    %s46 = sphi 0, %s46
    %s48 = sphi 0, %s46
    %s49 = sphi 0, %s48
    %s63 = sphi 0, %s49
    %s67 = sphi 0, %s67
    %s69 = sphi 0, %s67
    %s70 = sphi 0, %s69
    %s84 = sphi 0, %s70
    %s88 = sphi 0, %s88
    %s90 = sphi 0, %s88
    %s91 = sphi 0, %s90
    %s105 = sphi 0, %s91
    %s109 = sphi 0, %s109
    %s111 = sphi 0, %s109
    %s112 = sphi 0, %s111
    %s126 = sphi 0, %s112
    %s132 = sphi 0, %s134
    %s135 = sphi 0, %s132
    %s136 = sphi 0, %s135
    %s152 = sphi 0, %s136
  $region4: #{tpu_custom_call.1} parent=0 // loop_header_branch
    %15 = sbr.rel (%p13) target = $region8
  $region5: #{tpu_custom_call.1} parent=0 // loop_body
    %s17 = ssub.s32 %s12, 1
    %s18 = ssub.s32 %s12, 2
    %s19 = sadd.s32 %s12, 1
    %s20 = ssub.s32 %s12, %s19
    %p21 = scmp.eq.s32.totalorder %s20, 0
    %s23 = sadd.s32 %s22, 1
    %s24 = scalar_select %p21, %s22, %s23
    %p27 = pneg %p21
    %p28 = scmp.eq.s32.totalorder %s12, 1
    %p29 = por %p27, %p28
    %p30 = scmp.ne.s32.totalorder %s22, %s25
    %p31 = scmp.eq.s32.totalorder %s12, 0
    %p32 = por %p30, %p31
    %p33 = scmp.ne.s32.totalorder %s22, %s25
    %p34 = scmp.eq.s32.totalorder %s17, 1
    %p35 = por %p33, %p34
    %p36 = scmp.ne.s32.totalorder %s25, %s26
    %p37 = scmp.eq.s32.totalorder %s17, 0
    %p38 = por %p36, %p37
    %p39 = scmp.ne.s32.totalorder %s25, %s26
    %p40 = scmp.eq.s32.totalorder %s18, 1
    %p41 = por %p39, %p40
    %p43 = scmp.ne.s32.totalorder %s26, %s42
    %p44 = scmp.eq.s32.totalorder %s18, 0
    %p45 = por %p43, %p44
    %s47 = sadd.s32 %s46, 1
    %p50 = scmp.eq.s32.totalorder %s12, 1
    %p51 = scmp.ne.s32.totalorder %s46, %s48
    %p52 = scmp.eq.s32.totalorder %s12, 0
    %p53 = por %p51, %p52
    %p54 = scmp.ne.s32.totalorder %s46, %s48
    %p55 = scmp.eq.s32.totalorder %s17, 1
    %p56 = por %p54, %p55
    %p57 = scmp.ne.s32.totalorder %s48, %s49
    %p58 = scmp.eq.s32.totalorder %s17, 0
    %p59 = por %p57, %p58
    %p60 = scmp.ne.s32.totalorder %s48, %s49
    %p61 = scmp.eq.s32.totalorder %s18, 1
    %p62 = por %p60, %p61
    %p64 = scmp.ne.s32.totalorder %s49, %s63
    %p65 = scmp.eq.s32.totalorder %s18, 0
    %p66 = por %p64, %p65
    %s68 = sadd.s32 %s67, 1
    %p71 = scmp.eq.s32.totalorder %s12, 1
    %p72 = scmp.ne.s32.totalorder %s67, %s69
    %p73 = scmp.eq.s32.totalorder %s12, 0
    %p74 = por %p72, %p73
    %p75 = scmp.ne.s32.totalorder %s67, %s69
    %p76 = scmp.eq.s32.totalorder %s17, 1
    %p77 = por %p75, %p76
    %p78 = scmp.ne.s32.totalorder %s69, %s70
    %p79 = scmp.eq.s32.totalorder %s17, 0
    %p80 = por %p78, %p79
    %p81 = scmp.ne.s32.totalorder %s69, %s70
    %p82 = scmp.eq.s32.totalorder %s18, 1
    %p83 = por %p81, %p82
    %p85 = scmp.ne.s32.totalorder %s70, %s84
    %p86 = scmp.eq.s32.totalorder %s18, 0
    %p87 = por %p85, %p86
    %s89 = sadd.s32 %s88, 1
    %p92 = scmp.eq.s32.totalorder %s12, 1
    %p93 = scmp.ne.s32.totalorder %s88, %s90
    %p94 = scmp.eq.s32.totalorder %s12, 0
    %p95 = por %p93, %p94
    %p96 = scmp.ne.s32.totalorder %s88, %s90
    %p97 = scmp.eq.s32.totalorder %s17, 1
    %p98 = por %p96, %p97
    %p99 = scmp.ne.s32.totalorder %s90, %s91
    %p100 = scmp.eq.s32.totalorder %s17, 0
    %p101 = por %p99, %p100
    %p102 = scmp.ne.s32.totalorder %s90, %s91
    %p103 = scmp.eq.s32.totalorder %s18, 1
    %p104 = por %p102, %p103
    %p106 = scmp.ne.s32.totalorder %s91, %s105
    %p107 = scmp.eq.s32.totalorder %s18, 0
    %p108 = por %p106, %p107
    %s110 = sadd.s32 %s109, 1
    %p113 = scmp.eq.s32.totalorder %s12, 1
    %p114 = scmp.ne.s32.totalorder %s109, %s111
    %p115 = scmp.eq.s32.totalorder %s12, 0
    %p116 = por %p114, %p115
    %p117 = scmp.ne.s32.totalorder %s109, %s111
    %p118 = scmp.eq.s32.totalorder %s17, 1
    %p119 = por %p117, %p118
    %p120 = scmp.ne.s32.totalorder %s111, %s112
    %p121 = scmp.eq.s32.totalorder %s17, 0
    %p122 = por %p120, %p121
    %p123 = scmp.ne.s32.totalorder %s111, %s112
    %p124 = scmp.eq.s32.totalorder %s18, 1
    %p125 = por %p123, %p124
    %p127 = scmp.ne.s32.totalorder %s112, %s126
    %p128 = scmp.eq.s32.totalorder %s18, 0
    %p129 = por %p127, %p128
    %s130 = ssub.s32 %s12, %s19
    %p131 = scmp.eq.s32.totalorder %s130, 0
    %s133 = sadd.s32 %s132, 1
    %s134 = scalar_select %p131, %s132, %s133
    %p137 = pneg %p131
    %p138 = scmp.eq.s32.totalorder %s12, 1
    %p139 = por %p137, %p138
    %p140 = scmp.ne.s32.totalorder %s132, %s135
    %p141 = scmp.eq.s32.totalorder %s12, 0
    %p142 = por %p140, %p141
    %p143 = scmp.ne.s32.totalorder %s132, %s135
    %p144 = scmp.eq.s32.totalorder %s17, 1
    %p145 = por %p143, %p144
    %p146 = scmp.ne.s32.totalorder %s135, %s136
    %p147 = scmp.eq.s32.totalorder %s17, 0
    %p148 = por %p146, %p147
    %p149 = scmp.ne.s32.totalorder %s135, %s136
    %p150 = scmp.eq.s32.totalorder %s18, 1
    %p151 = por %p149, %p150
    %p153 = scmp.ne.s32.totalorder %s136, %s152
    %p154 = scmp.eq.s32.totalorder %s18, 0
    %p155 = por %p153, %p154
    %p156 = scmp.le.s32.totalorder 1, %s12
    %p157 = scmp.lt.s32.totalorder %s12, 3
    %p158 = pnand %p156, %p157
    %p159 = pneg %p158
    // Predicated region
    $region9: #{tpu_custom_call.1} parent=5 // pred_check
      _
    $region10: #{tpu_custom_call.1} parent=5 // pred_check_branch
      %161 = sbr.rel (%p158) target = $region12
    $region11: #{tpu_custom_call.1} parent=5 // pred_region
      %s162 = ssub.s32 %s12, 1
      // Predicated region
      $region13: #{tpu_custom_call.1} parent=11 // pred_check
        %p163 = pneg %p59
      $region14: #{tpu_custom_call.1} parent=11 // pred_check_branch
        %165 = sbr.rel (%p163) target = $region16
      $region15: #{tpu_custom_call.1} parent=11 // pred_region
        _
      $region16: #{tpu_custom_call.1} parent=11 // pred_fallthru
        _
      // Predicated region
      $region17: #{tpu_custom_call.1} parent=11 // pred_check
        %p166 = pneg %p80
      $region18: #{tpu_custom_call.1} parent=11 // pred_check_branch
        %168 = sbr.rel (%p166) target = $region20
      $region19: #{tpu_custom_call.1} parent=11 // pred_region
        _
      $region20: #{tpu_custom_call.1} parent=11 // pred_fallthru
        _
      // Predicated region
      $region21: #{tpu_custom_call.1} parent=11 // pred_check
        %p169 = pneg %p101
      $region22: #{tpu_custom_call.1} parent=11 // pred_check_branch
        %171 = sbr.rel (%p169) target = $region24
      $region23: #{tpu_custom_call.1} parent=11 // pred_region
        _
      $region24: #{tpu_custom_call.1} parent=11 // pred_fallthru
        _
      // Predicated region
      $region25: #{tpu_custom_call.1} parent=11 // pred_check
        %p172 = pneg %p122
      $region26: #{tpu_custom_call.1} parent=11 // pred_check_branch
        %174 = sbr.rel (%p172) target = $region28
      $region27: #{tpu_custom_call.1} parent=11 // pred_region
        _
      $region28: #{tpu_custom_call.1} parent=11 // pred_fallthru
        _
    $region12: #{tpu_custom_call.1} parent=5 // pred_fallthru
      _
    %p175 = scmp.lt.s32.totalorder %s12, 2
    // Predicated region
    $region29: #{tpu_custom_call.1} parent=5 // pred_check
      %p176 = pneg %p175
    $region30: #{tpu_custom_call.1} parent=5 // pred_check_branch
      %178 = sbr.rel (%p176) target = $region32
    $region31: #{tpu_custom_call.1} parent=5 // pred_region
      // Predicated region
      $region33: #{tpu_custom_call.1} parent=31 // pred_check
        %p179 = pneg %p32
      $region34: #{tpu_custom_call.1} parent=31 // pred_check_branch
        %181 = sbr.rel (%p179) target = $region36
      $region35: #{tpu_custom_call.1} parent=31 // pred_region
        %s182 = smul.u32 8, %s12
        %p183 = scmp.lt.s32.totalorder %s182, 15
        %s184 = scalar_select %p183, %s182, 15
        %s185 = smul.addr %s184, 8
        %s186 = scalar_lea.vmem %s0, %s185
        %s187 = smul.u32 8, %s12
      $region36: #{tpu_custom_call.1} parent=31 // pred_fallthru
        _
    $region32: #{tpu_custom_call.1} parent=5 // pred_fallthru
      _
    %p188 = scmp.le.s32.totalorder 1, %s12
    %p189 = scmp.lt.s32.totalorder %s12, 3
    %p190 = pnand %p188, %p189
    %p191 = pneg %p190
    // Predicated region
    $region37: #{tpu_custom_call.1} parent=5 // pred_check
      _
    $region38: #{tpu_custom_call.1} parent=5 // pred_check_branch
      %193 = sbr.rel (%p190) target = $region40
    $region39: #{tpu_custom_call.1} parent=5 // pred_region
      %s194 = ssub.s32 %s12, 1
      %s195 = smul.u32 8, %s17
      %p196 = scmp.lt.s32.totalorder %s195, 15
      %s197 = scalar_select %p196, %s195, 15
      %s198 = smul.addr %s197, 8
      %s199 = scalar_lea.vmem %s0, %s198
      %p200 = pneg %p38
      %p201 = pneg %p35
      %p202 = pneg %p59
      %p203 = pneg %p56
      %p204 = pneg %p80
      %p205 = pneg %p77
      %p206 = pneg %p101
      %p207 = pneg %p98
      %p208 = pneg %p122
      %p209 = pneg %p119
      %p210 = pneg %p148
      %p211 = pneg %p145
      %s212 = smul.u32 8, %s17
      %p213 = scmp.lt.s32.totalorder %s212, 15
      %s214 = scalar_select %p213, %s212, 15
      %s215 = smul.addr %s214, 8
      %s216 = scalar_lea.vmem %s5, %s215
      %s217 = smul.u32 8, %s17
      %p218 = scmp.lt.s32.totalorder %s217, 15
      %s219 = scalar_select %p218, %s217, 15
      %s220 = smul.addr %s219, 8
      %s221 = scalar_lea.vmem %s0, %s220
      %s222 = smul.u32 8, %s17
      %s223 = smul.u32 8, %s17
      %p224 = scmp.lt.s32.totalorder %s223, 15
      %s225 = scalar_select %p224, %s223, 15
      %s226 = smul.addr %s225, 8
      %s227 = scalar_lea.vmem %s5, %s226
      %s228 = smul.u32 8, %s17
      %v229 = vld [vmem:[%s221] sm:$0xff]
      %v230 = vld [vmem:[%s221 + $0x8] sm:$0xff]
      %v231 = vld [vmem:[%s221 + $0x10] sm:$0xff]
      %v232 = vld [vmem:[%s221 + $0x18] sm:$0xff]
      %v233 = vld [vmem:[%s221 + $0x20] sm:$0xff]
      %v234 = vld [vmem:[%s221 + $0x28] sm:$0xff]
      %v235 = vld [vmem:[%s221 + $0x30] sm:$0xff]
      %v236 = vld [vmem:[%s221 + $0x38] sm:$0xff]
      %v237 = vld [vmem:[%s1] sm:$0xff]
      %v238 = vld [vmem:[%s1 + $0x8] sm:$0xff]
      %v239 = vld [vmem:[%s1 + $0x10] sm:$0xff]
      %v240 = vld [vmem:[%s1 + $0x18] sm:$0xff]
      %v241 = vld [vmem:[%s2] sm:$0x1]
      %v243 = vlaneseq
      %v244 = vshrl.u32 %v243, 7
      %v245 = vsub.s32 0, %v244
      %v246 = vrot.slane %v241, %v245
      %vm248 = vcmask 261120
      %v250 = vsel %vm248, %v229, 0
      %v253 = vsel %vm248, %v230, 0
      %v256 = vsel %vm248, %v231, 0
      %v259 = vsel %vm248, %v232, 0
      %v262 = vsel %vm248, %v233, 0
      %v265 = vsel %vm248, %v234, 0
      %v268 = vsel %vm248, %v235, 0
      %v271 = vsel %vm248, %v236, 0
      %273 = vmatprep.subr.mxu0 0.0
      %v274 = vand.u32 %v237, 4294901760
      %275 = vmatpush1.msra.mxu0 %v274
      %276 = vmatprep.subr.mxu0 0.0
      %v277 = vand.u32 %v238, 4294901760
      %278 = vmatpush1.msra.mxu0 %v277
      %279 = vmatprep.subr.mxu0 0.0
      %v280 = vand.u32 %v239, 4294901760
      %281 = vmatpush1.msra.mxu0 %v280
      %282 = vmatprep.subr.mxu0 0.0
      %v283 = vand.u32 %v240, 4294901760
      %284 = vmatpush1.msra.mxu0 %v283
      %285 = vmatprep.subr.mxu0 0.0
      %286 = vmatpush1.msra.mxu0 0.0
      %287 = vmatprep.subr.mxu0 0.0
      %288 = vmatpush1.msra.mxu0 0.0
      %289 = vmatprep.subr.mxu0 0.0
      %290 = vmatpush1.msra.mxu0 0.0
      %291 = vmatprep.subr.mxu0 0.0
      %292 = vmatpush1.msra.mxu0 0.0
      %293 = vmatprep.subr.mxu0 0.0
      %294 = vmatpush1.msra.mxu0 0.0
      %295 = vmatprep.subr.mxu0 0.0
      %296 = vmatpush1.msra.mxu0 0.0
      %297 = vmatprep.subr.mxu0 0.0
      %298 = vmatpush1.msra.mxu0 0.0
      %299 = vmatprep.subr.mxu0 0.0
      %300 = vmatpush1.msra.mxu0 0.0
      %301 = vmatprep.subr.mxu0 0.0
      %302 = vmatpush1.msra.mxu0 0.0
      %303 = vmatprep.subr.mxu0 0.0
      %304 = vmatpush1.msra.mxu0 0.0
      %305 = vmatprep.subr.mxu0 0.0
      %306 = vmatpush1.msra.mxu0 0.0
      %307 = vmatprep.subr.mxu0 0.0
      %308 = vmatpush1.msra.mxu0 0.0
      %309 = vmatprep.subr.mxu0 0.0
      %310 = vmatpush1.msra.mxu0 0.0
      %311 = vmatprep.subr.mxu0 0.0
      %312 = vmatpush1.msra.mxu0 0.0
      %313 = vmatprep.subr.mxu0 0.0
      %314 = vmatpush1.msra.mxu0 0.0
      %315 = vmatprep.subr.mxu0 0.0
      %316 = vmatpush1.msra.mxu0 0.0
      %317 = vmatprep.subr.mxu0 0.0
      %318 = vmatpush1.msra.mxu0 0.0
      %319 = vmatprep.subr.mxu0 0.0
      %320 = vmatpush1.msra.mxu0 0.0
      %321 = vmatprep.subr.mxu0 0.0
      %322 = vmatpush1.msra.mxu0 0.0
      %323 = vmatprep.subr.mxu0 0.0
      %324 = vmatpush1.msra.mxu0 0.0
      %325 = vmatprep.subr.mxu0 0.0
      %326 = vmatpush1.msra.mxu0 0.0
      %327 = vmatprep.subr.mxu0 0.0
      %328 = vmatpush1.msra.mxu0 0.0
      %329 = vmatprep.subr.mxu0 0.0
      %330 = vmatpush1.msra.mxu0 0.0
      %331 = vmatprep.subr.mxu0 0.0
      %332 = vmatpush1.msra.mxu0 0.0
      %333 = vmatprep.subr.mxu0 0.0
      %334 = vmatpush1.msra.mxu0 0.0
      %335 = vmatprep.subr.mxu0 0.0
      %336 = vmatpush1.msra.mxu0 0.0
      %337 = vmatprep.subr.mxu0 0.0
      %338 = vmatpush1.msra.mxu0 0.0
      %339 = vmatprep.subr.mxu0 0.0
      %340 = vmatpush1.msra.mxu0 0.0
      %341 = vmatprep.mubr.f32.mxu0 0.0
      %v342 = vand.u32 %v250, 4294901760
      %v343 = vsub.f32 %v250, %v342
      %v344 = vand.u32 %v343, 4294901760
      %v345 = vsub.f32 %v343, %v344
      %v346 = vand.u32 %v345, 4294901760
      %347 = vmatmul.mubr.f32.gmra.mrb[0].mxu0 %v346
      %v348 = vpop.f32.mrb[0].mxu0
      %v349 = vadd.f32 %v246, %v348
      %v350 = vpop.f32.mrb[0].mxu0
      %351 = vmatprep.mubr.f32.mxu0 0.0
      %v352 = vand.u32 %v253, 4294901760
      %v353 = vsub.f32 %v253, %v352
      %v354 = vand.u32 %v353, 4294901760
      %v355 = vsub.f32 %v353, %v354
      %v356 = vand.u32 %v355, 4294901760
      %357 = vmatmul.mubr.f32.gmra.mrb[0].mxu0 %v356
      %v358 = vpop.f32.mrb[0].mxu0
      %v359 = vadd.f32 %v246, %v358
      %v360 = vpop.f32.mrb[0].mxu0
      %361 = vmatprep.mubr.f32.mxu0 0.0
      %v362 = vand.u32 %v256, 4294901760
      %v363 = vsub.f32 %v256, %v362
      %v364 = vand.u32 %v363, 4294901760
      %v365 = vsub.f32 %v363, %v364
      %v366 = vand.u32 %v365, 4294901760
      %367 = vmatmul.mubr.f32.gmra.mrb[0].mxu0 %v366
      %v368 = vpop.f32.mrb[0].mxu0
      %v369 = vadd.f32 %v246, %v368
      %v370 = vpop.f32.mrb[0].mxu0
      %371 = vmatprep.mubr.f32.mxu0 0.0
      %v372 = vand.u32 %v259, 4294901760
      %v373 = vsub.f32 %v259, %v372
      %v374 = vand.u32 %v373, 4294901760
      %v375 = vsub.f32 %v373, %v374
      %v376 = vand.u32 %v375, 4294901760
      %377 = vmatmul.mubr.f32.gmra.mrb[0].mxu0 %v376
      %v378 = vpop.f32.mrb[0].mxu0
      %v379 = vadd.f32 %v246, %v378
      %v380 = vpop.f32.mrb[0].mxu0
      %381 = vmatprep.mubr.f32.mxu0 0.0
      %v382 = vand.u32 %v262, 4294901760
      %v383 = vsub.f32 %v262, %v382
      %v384 = vand.u32 %v383, 4294901760
      %v385 = vsub.f32 %v383, %v384
      %v386 = vand.u32 %v385, 4294901760
      %387 = vmatmul.mubr.f32.gmra.mrb[0].mxu0 %v386
      %v388 = vpop.f32.mrb[0].mxu0
      %v389 = vadd.f32 %v246, %v388
      %v390 = vpop.f32.mrb[0].mxu0
      %391 = vmatprep.mubr.f32.mxu0 0.0
      %v392 = vand.u32 %v265, 4294901760
      %v393 = vsub.f32 %v265, %v392
      %v394 = vand.u32 %v393, 4294901760
      %v395 = vsub.f32 %v393, %v394
      %v396 = vand.u32 %v395, 4294901760
      %397 = vmatmul.mubr.f32.gmra.mrb[0].mxu0 %v396
      %v398 = vpop.f32.mrb[0].mxu0
      %v399 = vadd.f32 %v246, %v398
      %v400 = vpop.f32.mrb[0].mxu0
      %401 = vmatprep.mubr.f32.mxu0 0.0
      %v402 = vand.u32 %v268, 4294901760
      %v403 = vsub.f32 %v268, %v402
      %v404 = vand.u32 %v403, 4294901760
      %v405 = vsub.f32 %v403, %v404
      %v406 = vand.u32 %v405, 4294901760
      %407 = vmatmul.mubr.f32.gmra.mrb[0].mxu0 %v406
      %v408 = vpop.f32.mrb[0].mxu0
      %v409 = vadd.f32 %v246, %v408
      %v410 = vpop.f32.mrb[0].mxu0
      %411 = vmatprep.mubr.f32.mxu0 0.0
      %v412 = vand.u32 %v271, 4294901760
      %v413 = vsub.f32 %v271, %v412
      %v414 = vand.u32 %v413, 4294901760
      %v415 = vsub.f32 %v413, %v414
      %v416 = vand.u32 %v415, 4294901760
      %417 = vmatmul.mubr.f32.gmra.mrb[0].mxu0 %v416
      %v418 = vpop.f32.mrb[0].mxu0
      %v419 = vadd.f32 %v246, %v418
      %v420 = vpop.f32.mrb[0].mxu0
      %421 = vdwg.mxu0
      %422 = vmatprep.subr.mxu0 0.0
      %v423 = vand.u32 %v237, 4294901760
      %v424 = vsub.f32 %v237, %v423
      %v425 = vand.u32 %v424, 4294901760
      %v426 = vsub.f32 %v424, %v425
      %v427 = vand.u32 %v426, 4294901760
      %428 = vmatpush1.msra.mxu0 %v427
      %429 = vmatprep.subr.mxu0 0.0
      %v430 = vand.u32 %v238, 4294901760
      %v431 = vsub.f32 %v238, %v430
      %v432 = vand.u32 %v431, 4294901760
      %v433 = vsub.f32 %v431, %v432
      %v434 = vand.u32 %v433, 4294901760
      %435 = vmatpush1.msra.mxu0 %v434
      %436 = vmatprep.subr.mxu0 0.0
      %v437 = vand.u32 %v239, 4294901760
      %v438 = vsub.f32 %v239, %v437
      %v439 = vand.u32 %v438, 4294901760
      %v440 = vsub.f32 %v438, %v439
      %v441 = vand.u32 %v440, 4294901760
      %442 = vmatpush1.msra.mxu0 %v441
      %443 = vmatprep.subr.mxu0 0.0
      %v444 = vand.u32 %v240, 4294901760
      %v445 = vsub.f32 %v240, %v444
      %v446 = vand.u32 %v445, 4294901760
      %v447 = vsub.f32 %v445, %v446
      %v448 = vand.u32 %v447, 4294901760
      %449 = vmatpush1.msra.mxu0 %v448
      %450 = vmatprep.subr.mxu0 0.0
      %451 = vmatpush1.msra.mxu0 0.0
      %452 = vmatprep.subr.mxu0 0.0
      %453 = vmatpush1.msra.mxu0 0.0
      %454 = vmatprep.subr.mxu0 0.0
      %455 = vmatpush1.msra.mxu0 0.0
      %456 = vmatprep.subr.mxu0 0.0
      %457 = vmatpush1.msra.mxu0 0.0
      %458 = vmatprep.subr.mxu0 0.0
      %459 = vmatpush1.msra.mxu0 0.0
      %460 = vmatprep.subr.mxu0 0.0
      %461 = vmatpush1.msra.mxu0 0.0
      %462 = vmatprep.subr.mxu0 0.0
      %463 = vmatpush1.msra.mxu0 0.0
      %464 = vmatprep.subr.mxu0 0.0
      %465 = vmatpush1.msra.mxu0 0.0
      %466 = vmatprep.subr.mxu0 0.0
      %467 = vmatpush1.msra.mxu0 0.0
      %468 = vmatprep.subr.mxu0 0.0
      %469 = vmatpush1.msra.mxu0 0.0
      %470 = vmatprep.subr.mxu0 0.0
      %471 = vmatpush1.msra.mxu0 0.0
      %472 = vmatprep.subr.mxu0 0.0
      %473 = vmatpush1.msra.mxu0 0.0
      %474 = vmatprep.subr.mxu0 0.0
      %475 = vmatpush1.msra.mxu0 0.0
      %476 = vmatprep.subr.mxu0 0.0
      %477 = vmatpush1.msra.mxu0 0.0
      %478 = vmatprep.subr.mxu0 0.0
      %479 = vmatpush1.msra.mxu0 0.0
      %480 = vmatprep.subr.mxu0 0.0
      %481 = vmatpush1.msra.mxu0 0.0
      %482 = vmatprep.subr.mxu0 0.0
      %483 = vmatpush1.msra.mxu0 0.0
      %484 = vmatprep.subr.mxu0 0.0
      %485 = vmatpush1.msra.mxu0 0.0
      %486 = vmatprep.subr.mxu0 0.0
      %487 = vmatpush1.msra.mxu0 0.0
      %488 = vmatprep.subr.mxu0 0.0
      %489 = vmatpush1.msra.mxu0 0.0
      %490 = vmatprep.subr.mxu0 0.0
      %491 = vmatpush1.msra.mxu0 0.0
      %492 = vmatprep.subr.mxu0 0.0
      %493 = vmatpush1.msra.mxu0 0.0
      %494 = vmatprep.subr.mxu0 0.0
      %495 = vmatpush1.msra.mxu0 0.0
      %496 = vmatprep.subr.mxu0 0.0
      %497 = vmatpush1.msra.mxu0 0.0
      %498 = vmatprep.subr.mxu0 0.0
      %499 = vmatpush1.msra.mxu0 0.0
      %500 = vmatprep.subr.mxu0 0.0
      %501 = vmatpush1.msra.mxu0 0.0
      %502 = vmatprep.subr.mxu0 0.0
      %503 = vmatpush1.msra.mxu0 0.0
      %504 = vmatprep.subr.mxu0 0.0
      %505 = vmatpush1.msra.mxu0 0.0
      %506 = vmatprep.mubr.f32.mxu0 0.0
      %v507 = vand.u32 %v250, 4294901760
      %508 = vmatmul.mubr.f32.gmra.mrb[0].mxu0 %v507
      %v509 = vpop.f32.mrb[0].mxu0
      %v510 = vadd.f32 %v349, %v509
      %v511 = vpop.f32.mrb[0].mxu0
      %512 = vmatprep.mubr.f32.mxu0 0.0
      %v513 = vand.u32 %v253, 4294901760
      %514 = vmatmul.mubr.f32.gmra.mrb[0].mxu0 %v513
      %v515 = vpop.f32.mrb[0].mxu0
      %v516 = vadd.f32 %v359, %v515
      %v517 = vpop.f32.mrb[0].mxu0
      %518 = vmatprep.mubr.f32.mxu0 0.0
      %v519 = vand.u32 %v256, 4294901760
      %520 = vmatmul.mubr.f32.gmra.mrb[0].mxu0 %v519
      %v521 = vpop.f32.mrb[0].mxu0
      %v522 = vadd.f32 %v369, %v521
      %v523 = vpop.f32.mrb[0].mxu0
      %524 = vmatprep.mubr.f32.mxu0 0.0
      %v525 = vand.u32 %v259, 4294901760
      %526 = vmatmul.mubr.f32.gmra.mrb[0].mxu0 %v525
      %v527 = vpop.f32.mrb[0].mxu0
      %v528 = vadd.f32 %v379, %v527
      %v529 = vpop.f32.mrb[0].mxu0
      %530 = vmatprep.mubr.f32.mxu0 0.0
      %v531 = vand.u32 %v262, 4294901760
      %532 = vmatmul.mubr.f32.gmra.mrb[0].mxu0 %v531
      %v533 = vpop.f32.mrb[0].mxu0
      %v534 = vadd.f32 %v389, %v533
      %v535 = vpop.f32.mrb[0].mxu0
      %536 = vmatprep.mubr.f32.mxu0 0.0
      %v537 = vand.u32 %v265, 4294901760
      %538 = vmatmul.mubr.f32.gmra.mrb[0].mxu0 %v537
      %v539 = vpop.f32.mrb[0].mxu0
      %v540 = vadd.f32 %v399, %v539
      %v541 = vpop.f32.mrb[0].mxu0
      %542 = vmatprep.mubr.f32.mxu0 0.0
      %v543 = vand.u32 %v268, 4294901760
      %544 = vmatmul.mubr.f32.gmra.mrb[0].mxu0 %v543
      %v545 = vpop.f32.mrb[0].mxu0
      %v546 = vadd.f32 %v409, %v545
      %v547 = vpop.f32.mrb[0].mxu0
      %548 = vmatprep.mubr.f32.mxu0 0.0
      %v549 = vand.u32 %v271, 4294901760
      %550 = vmatmul.mubr.f32.gmra.mrb[0].mxu0 %v549
      %v551 = vpop.f32.mrb[0].mxu0
      %v552 = vadd.f32 %v419, %v551
      %v553 = vpop.f32.mrb[0].mxu0
      %554 = vdwg.mxu0
      %555 = vmatprep.subr.mxu0 0.0
      %v556 = vand.u32 %v237, 4294901760
      %v557 = vsub.f32 %v237, %v556
      %558 = vmatpush1.msra.mxu0 %v557
      %559 = vmatprep.subr.mxu0 0.0
      %v560 = vand.u32 %v238, 4294901760
      %v561 = vsub.f32 %v238, %v560
      %562 = vmatpush1.msra.mxu0 %v561
      %563 = vmatprep.subr.mxu0 0.0
      %v564 = vand.u32 %v239, 4294901760
      %v565 = vsub.f32 %v239, %v564
      %566 = vmatpush1.msra.mxu0 %v565
      %567 = vmatprep.subr.mxu0 0.0
      %v568 = vand.u32 %v240, 4294901760
      %v569 = vsub.f32 %v240, %v568
      %570 = vmatpush1.msra.mxu0 %v569
      %571 = vmatprep.subr.mxu0 0.0
      %572 = vmatpush1.msra.mxu0 0.0
      %573 = vmatprep.subr.mxu0 0.0
      %574 = vmatpush1.msra.mxu0 0.0
      %575 = vmatprep.subr.mxu0 0.0
      %576 = vmatpush1.msra.mxu0 0.0
      %577 = vmatprep.subr.mxu0 0.0
      %578 = vmatpush1.msra.mxu0 0.0
      %579 = vmatprep.subr.mxu0 0.0
      %580 = vmatpush1.msra.mxu0 0.0
      %581 = vmatprep.subr.mxu0 0.0
      %582 = vmatpush1.msra.mxu0 0.0
      %583 = vmatprep.subr.mxu0 0.0
      %584 = vmatpush1.msra.mxu0 0.0
      %585 = vmatprep.subr.mxu0 0.0
      %586 = vmatpush1.msra.mxu0 0.0
      %587 = vmatprep.subr.mxu0 0.0
      %588 = vmatpush1.msra.mxu0 0.0
      %589 = vmatprep.subr.mxu0 0.0
      %590 = vmatpush1.msra.mxu0 0.0
      %591 = vmatprep.subr.mxu0 0.0
      %592 = vmatpush1.msra.mxu0 0.0
      %593 = vmatprep.subr.mxu0 0.0
      %594 = vmatpush1.msra.mxu0 0.0
      %595 = vmatprep.subr.mxu0 0.0
      %596 = vmatpush1.msra.mxu0 0.0
      %597 = vmatprep.subr.mxu0 0.0
      %598 = vmatpush1.msra.mxu0 0.0
      %599 = vmatprep.subr.mxu0 0.0
      %600 = vmatpush1.msra.mxu0 0.0
      %601 = vmatprep.subr.mxu0 0.0
      %602 = vmatpush1.msra.mxu0 0.0
      %603 = vmatprep.subr.mxu0 0.0
      %604 = vmatpush1.msra.mxu0 0.0
      %605 = vmatprep.subr.mxu0 0.0
      %606 = vmatpush1.msra.mxu0 0.0
      %607 = vmatprep.subr.mxu0 0.0
      %608 = vmatpush1.msra.mxu0 0.0
      %609 = vmatprep.subr.mxu0 0.0
      %610 = vmatpush1.msra.mxu0 0.0
      %611 = vmatprep.subr.mxu0 0.0
      %612 = vmatpush1.msra.mxu0 0.0
      %613 = vmatprep.subr.mxu0 0.0
      %614 = vmatpush1.msra.mxu0 0.0
      %615 = vmatprep.subr.mxu0 0.0
      %616 = vmatpush1.msra.mxu0 0.0
      %617 = vmatprep.subr.mxu0 0.0
      %618 = vmatpush1.msra.mxu0 0.0
      %619 = vmatprep.subr.mxu0 0.0
      %620 = vmatpush1.msra.mxu0 0.0
      %621 = vmatprep.subr.mxu0 0.0
      %622 = vmatpush1.msra.mxu0 0.0
      %623 = vmatprep.subr.mxu0 0.0
      %624 = vmatpush1.msra.mxu0 0.0
      %625 = vmatprep.subr.mxu0 0.0
      %626 = vmatpush1.msra.mxu0 0.0
      %627 = vmatprep.mubr.f32.mxu0 0.0
      %v628 = vand.u32 %v250, 4294901760
      %v629 = vsub.f32 %v250, %v628
      %630 = vmatmul.mubr.f32.gmra.mrb[0].mxu0 %v629
      %v631 = vpop.f32.mrb[0].mxu0
      %v632 = vadd.f32 %v510, %v631
      %v633 = vpop.f32.mrb[0].mxu0
      %634 = vmatprep.mubr.f32.mxu0 0.0
      %v635 = vand.u32 %v253, 4294901760
      %v636 = vsub.f32 %v253, %v635
      %637 = vmatmul.mubr.f32.gmra.mrb[0].mxu0 %v636
      %v638 = vpop.f32.mrb[0].mxu0
      %v639 = vadd.f32 %v516, %v638
      %v640 = vpop.f32.mrb[0].mxu0
      %641 = vmatprep.mubr.f32.mxu0 0.0
      %v642 = vand.u32 %v256, 4294901760
      %v643 = vsub.f32 %v256, %v642
      %644 = vmatmul.mubr.f32.gmra.mrb[0].mxu0 %v643
      %v645 = vpop.f32.mrb[0].mxu0
      %v646 = vadd.f32 %v522, %v645
      %v647 = vpop.f32.mrb[0].mxu0
      %648 = vmatprep.mubr.f32.mxu0 0.0
      %v649 = vand.u32 %v259, 4294901760
      %v650 = vsub.f32 %v259, %v649
      %651 = vmatmul.mubr.f32.gmra.mrb[0].mxu0 %v650
      %v652 = vpop.f32.mrb[0].mxu0
      %v653 = vadd.f32 %v528, %v652
      %v654 = vpop.f32.mrb[0].mxu0
      %655 = vmatprep.mubr.f32.mxu0 0.0
      %v656 = vand.u32 %v262, 4294901760
      %v657 = vsub.f32 %v262, %v656
      %658 = vmatmul.mubr.f32.gmra.mrb[0].mxu0 %v657
      %v659 = vpop.f32.mrb[0].mxu0
      %v660 = vadd.f32 %v534, %v659
      %v661 = vpop.f32.mrb[0].mxu0
      %662 = vmatprep.mubr.f32.mxu0 0.0
      %v663 = vand.u32 %v265, 4294901760
      %v664 = vsub.f32 %v265, %v663
      %665 = vmatmul.mubr.f32.gmra.mrb[0].mxu0 %v664
      %v666 = vpop.f32.mrb[0].mxu0
      %v667 = vadd.f32 %v540, %v666
      %v668 = vpop.f32.mrb[0].mxu0
      %669 = vmatprep.mubr.f32.mxu0 0.0
      %v670 = vand.u32 %v268, 4294901760
      %v671 = vsub.f32 %v268, %v670
      %672 = vmatmul.mubr.f32.gmra.mrb[0].mxu0 %v671
      %v673 = vpop.f32.mrb[0].mxu0
      %v674 = vadd.f32 %v546, %v673
      %v675 = vpop.f32.mrb[0].mxu0
      %676 = vmatprep.mubr.f32.mxu0 0.0
      %v677 = vand.u32 %v271, 4294901760
      %v678 = vsub.f32 %v271, %v677
      %679 = vmatmul.mubr.f32.gmra.mrb[0].mxu0 %v678
      %v680 = vpop.f32.mrb[0].mxu0
      %v681 = vadd.f32 %v552, %v680
      %v682 = vpop.f32.mrb[0].mxu0
      %683 = vdwg.mxu0
      %684 = vmatprep.subr.mxu0 0.0
      %v685 = vand.u32 %v237, 4294901760
      %686 = vmatpush1.msra.mxu0 %v685
      %687 = vmatprep.subr.mxu0 0.0
      %v688 = vand.u32 %v238, 4294901760
      %689 = vmatpush1.msra.mxu0 %v688
      %690 = vmatprep.subr.mxu0 0.0
      %v691 = vand.u32 %v239, 4294901760
      %692 = vmatpush1.msra.mxu0 %v691
      %693 = vmatprep.subr.mxu0 0.0
      %v694 = vand.u32 %v240, 4294901760
      %695 = vmatpush1.msra.mxu0 %v694
      %696 = vmatprep.subr.mxu0 0.0
      %697 = vmatpush1.msra.mxu0 0.0
      %698 = vmatprep.subr.mxu0 0.0
      %699 = vmatpush1.msra.mxu0 0.0
      %700 = vmatprep.subr.mxu0 0.0
      %701 = vmatpush1.msra.mxu0 0.0
      %702 = vmatprep.subr.mxu0 0.0
      %703 = vmatpush1.msra.mxu0 0.0
      %704 = vmatprep.subr.mxu0 0.0
      %705 = vmatpush1.msra.mxu0 0.0
      %706 = vmatprep.subr.mxu0 0.0
      %707 = vmatpush1.msra.mxu0 0.0
      %708 = vmatprep.subr.mxu0 0.0
      %709 = vmatpush1.msra.mxu0 0.0
      %710 = vmatprep.subr.mxu0 0.0
      %711 = vmatpush1.msra.mxu0 0.0
      %712 = vmatprep.subr.mxu0 0.0
      %713 = vmatpush1.msra.mxu0 0.0
      %714 = vmatprep.subr.mxu0 0.0
      %715 = vmatpush1.msra.mxu0 0.0
      %716 = vmatprep.subr.mxu0 0.0
      %717 = vmatpush1.msra.mxu0 0.0
      %718 = vmatprep.subr.mxu0 0.0
      %719 = vmatpush1.msra.mxu0 0.0
      %720 = vmatprep.subr.mxu0 0.0
      %721 = vmatpush1.msra.mxu0 0.0
      %722 = vmatprep.subr.mxu0 0.0
      %723 = vmatpush1.msra.mxu0 0.0
      %724 = vmatprep.subr.mxu0 0.0
      %725 = vmatpush1.msra.mxu0 0.0
      %726 = vmatprep.subr.mxu0 0.0
      %727 = vmatpush1.msra.mxu0 0.0
      %728 = vmatprep.subr.mxu0 0.0
      %729 = vmatpush1.msra.mxu0 0.0
      %730 = vmatprep.subr.mxu0 0.0
      %731 = vmatpush1.msra.mxu0 0.0
      %732 = vmatprep.subr.mxu0 0.0
      %733 = vmatpush1.msra.mxu0 0.0
      %734 = vmatprep.subr.mxu0 0.0
      %735 = vmatpush1.msra.mxu0 0.0
      %736 = vmatprep.subr.mxu0 0.0
      %737 = vmatpush1.msra.mxu0 0.0
      %738 = vmatprep.subr.mxu0 0.0
      %739 = vmatpush1.msra.mxu0 0.0
      %740 = vmatprep.subr.mxu0 0.0
      %741 = vmatpush1.msra.mxu0 0.0
      %742 = vmatprep.subr.mxu0 0.0
      %743 = vmatpush1.msra.mxu0 0.0
      %744 = vmatprep.subr.mxu0 0.0
      %745 = vmatpush1.msra.mxu0 0.0
      %746 = vmatprep.subr.mxu0 0.0
      %747 = vmatpush1.msra.mxu0 0.0
      %748 = vmatprep.subr.mxu0 0.0
      %749 = vmatpush1.msra.mxu0 0.0
      %750 = vmatprep.subr.mxu0 0.0
      %751 = vmatpush1.msra.mxu0 0.0
      %752 = vmatprep.mubr.f32.mxu0 0.0
      %v753 = vand.u32 %v250, 4294901760
      %v754 = vsub.f32 %v250, %v753
      %v755 = vand.u32 %v754, 4294901760
      %756 = vmatmul.mubr.f32.gmra.mrb[0].mxu0 %v755
      %v757 = vpop.f32.mrb[0].mxu0
      %v758 = vadd.f32 %v632, %v757
      %v759 = vpop.f32.mrb[0].mxu0
      %760 = vmatprep.mubr.f32.mxu0 0.0
      %v761 = vand.u32 %v253, 4294901760
      %v762 = vsub.f32 %v253, %v761
      %v763 = vand.u32 %v762, 4294901760
      %764 = vmatmul.mubr.f32.gmra.mrb[0].mxu0 %v763
      %v765 = vpop.f32.mrb[0].mxu0
      %v766 = vadd.f32 %v639, %v765
      %v767 = vpop.f32.mrb[0].mxu0
      %768 = vmatprep.mubr.f32.mxu0 0.0
      %v769 = vand.u32 %v256, 4294901760
      %v770 = vsub.f32 %v256, %v769
      %v771 = vand.u32 %v770, 4294901760
      %772 = vmatmul.mubr.f32.gmra.mrb[0].mxu0 %v771
      %v773 = vpop.f32.mrb[0].mxu0
      %v774 = vadd.f32 %v646, %v773
      %v775 = vpop.f32.mrb[0].mxu0
      %776 = vmatprep.mubr.f32.mxu0 0.0
      %v777 = vand.u32 %v259, 4294901760
      %v778 = vsub.f32 %v259, %v777
      %v779 = vand.u32 %v778, 4294901760
      %780 = vmatmul.mubr.f32.gmra.mrb[0].mxu0 %v779
      %v781 = vpop.f32.mrb[0].mxu0
      %v782 = vadd.f32 %v653, %v781
      %v783 = vpop.f32.mrb[0].mxu0
      %784 = vmatprep.mubr.f32.mxu0 0.0
      %v785 = vand.u32 %v262, 4294901760
      %v786 = vsub.f32 %v262, %v785
      %v787 = vand.u32 %v786, 4294901760
      %788 = vmatmul.mubr.f32.gmra.mrb[0].mxu0 %v787
      %v789 = vpop.f32.mrb[0].mxu0
      %v790 = vadd.f32 %v660, %v789
      %v791 = vpop.f32.mrb[0].mxu0
      %792 = vmatprep.mubr.f32.mxu0 0.0
      %v793 = vand.u32 %v265, 4294901760
      %v794 = vsub.f32 %v265, %v793
      %v795 = vand.u32 %v794, 4294901760
      %796 = vmatmul.mubr.f32.gmra.mrb[0].mxu0 %v795
      %v797 = vpop.f32.mrb[0].mxu0
      %v798 = vadd.f32 %v667, %v797
      %v799 = vpop.f32.mrb[0].mxu0
      %800 = vmatprep.mubr.f32.mxu0 0.0
      %v801 = vand.u32 %v268, 4294901760
      %v802 = vsub.f32 %v268, %v801
      %v803 = vand.u32 %v802, 4294901760
      %804 = vmatmul.mubr.f32.gmra.mrb[0].mxu0 %v803
      %v805 = vpop.f32.mrb[0].mxu0
      %v806 = vadd.f32 %v674, %v805
      %v807 = vpop.f32.mrb[0].mxu0
      %808 = vmatprep.mubr.f32.mxu0 0.0
      %v809 = vand.u32 %v271, 4294901760
      %v810 = vsub.f32 %v271, %v809
      %v811 = vand.u32 %v810, 4294901760
      %812 = vmatmul.mubr.f32.gmra.mrb[0].mxu0 %v811
      %v813 = vpop.f32.mrb[0].mxu0
      %v814 = vadd.f32 %v681, %v813
      %v815 = vpop.f32.mrb[0].mxu0
      %816 = vdwg.mxu0
      %817 = vmatprep.subr.mxu0 0.0
      %v818 = vand.u32 %v237, 4294901760
      %v819 = vsub.f32 %v237, %v818
      %v820 = vand.u32 %v819, 4294901760
      %821 = vmatpush1.msra.mxu0 %v820
      %822 = vmatprep.subr.mxu0 0.0
      %v823 = vand.u32 %v238, 4294901760
      %v824 = vsub.f32 %v238, %v823
      %v825 = vand.u32 %v824, 4294901760
      %826 = vmatpush1.msra.mxu0 %v825
      %827 = vmatprep.subr.mxu0 0.0
      %v828 = vand.u32 %v239, 4294901760
      %v829 = vsub.f32 %v239, %v828
      %v830 = vand.u32 %v829, 4294901760
      %831 = vmatpush1.msra.mxu0 %v830
      %832 = vmatprep.subr.mxu0 0.0
      %v833 = vand.u32 %v240, 4294901760
      %v834 = vsub.f32 %v240, %v833
      %v835 = vand.u32 %v834, 4294901760
      %836 = vmatpush1.msra.mxu0 %v835
      %837 = vmatprep.subr.mxu0 0.0
      %838 = vmatpush1.msra.mxu0 0.0
      %839 = vmatprep.subr.mxu0 0.0
      %840 = vmatpush1.msra.mxu0 0.0
      %841 = vmatprep.subr.mxu0 0.0
      %842 = vmatpush1.msra.mxu0 0.0
      %843 = vmatprep.subr.mxu0 0.0
      %844 = vmatpush1.msra.mxu0 0.0
      %845 = vmatprep.subr.mxu0 0.0
      %846 = vmatpush1.msra.mxu0 0.0
      %847 = vmatprep.subr.mxu0 0.0
      %848 = vmatpush1.msra.mxu0 0.0
      %849 = vmatprep.subr.mxu0 0.0
      %850 = vmatpush1.msra.mxu0 0.0
      %851 = vmatprep.subr.mxu0 0.0
      %852 = vmatpush1.msra.mxu0 0.0
      %853 = vmatprep.subr.mxu0 0.0
      %854 = vmatpush1.msra.mxu0 0.0
      %855 = vmatprep.subr.mxu0 0.0
      %856 = vmatpush1.msra.mxu0 0.0
      %857 = vmatprep.subr.mxu0 0.0
      %858 = vmatpush1.msra.mxu0 0.0
      %859 = vmatprep.subr.mxu0 0.0
      %860 = vmatpush1.msra.mxu0 0.0
      %861 = vmatprep.subr.mxu0 0.0
      %862 = vmatpush1.msra.mxu0 0.0
      %863 = vmatprep.subr.mxu0 0.0
      %864 = vmatpush1.msra.mxu0 0.0
      %865 = vmatprep.subr.mxu0 0.0
      %866 = vmatpush1.msra.mxu0 0.0
      %867 = vmatprep.subr.mxu0 0.0
      %868 = vmatpush1.msra.mxu0 0.0
      %869 = vmatprep.subr.mxu0 0.0
      %870 = vmatpush1.msra.mxu0 0.0
      %871 = vmatprep.subr.mxu0 0.0
      %872 = vmatpush1.msra.mxu0 0.0
      %873 = vmatprep.subr.mxu0 0.0
      %874 = vmatpush1.msra.mxu0 0.0
      %875 = vmatprep.subr.mxu0 0.0
      %876 = vmatpush1.msra.mxu0 0.0
      %877 = vmatprep.subr.mxu0 0.0
      %878 = vmatpush1.msra.mxu0 0.0
      %879 = vmatprep.subr.mxu0 0.0
      %880 = vmatpush1.msra.mxu0 0.0
      %881 = vmatprep.subr.mxu0 0.0
      %882 = vmatpush1.msra.mxu0 0.0
      %883 = vmatprep.subr.mxu0 0.0
      %884 = vmatpush1.msra.mxu0 0.0
      %885 = vmatprep.subr.mxu0 0.0
      %886 = vmatpush1.msra.mxu0 0.0
      %887 = vmatprep.subr.mxu0 0.0
      %888 = vmatpush1.msra.mxu0 0.0
      %889 = vmatprep.subr.mxu0 0.0
      %890 = vmatpush1.msra.mxu0 0.0
      %891 = vmatprep.subr.mxu0 0.0
      %892 = vmatpush1.msra.mxu0 0.0
      %893 = vmatprep.mubr.f32.mxu0 0.0
      %v894 = vand.u32 %v250, 4294901760
      %895 = vmatmul.mubr.f32.gmra.mrb[0].mxu0 %v894
      %v896 = vpop.f32.mrb[0].mxu0
      %v897 = vadd.f32 %v758, %v896
      %v898 = vpop.f32.mrb[0].mxu0
      %899 = vmatprep.mubr.f32.mxu0 0.0
      %v900 = vand.u32 %v253, 4294901760
      %901 = vmatmul.mubr.f32.gmra.mrb[0].mxu0 %v900
      %v902 = vpop.f32.mrb[0].mxu0
      %v903 = vadd.f32 %v766, %v902
      %v904 = vpop.f32.mrb[0].mxu0
      %905 = vmatprep.mubr.f32.mxu0 0.0
      %v906 = vand.u32 %v256, 4294901760
      %907 = vmatmul.mubr.f32.gmra.mrb[0].mxu0 %v906
      %v908 = vpop.f32.mrb[0].mxu0
      %v909 = vadd.f32 %v774, %v908
      %v910 = vpop.f32.mrb[0].mxu0
      %911 = vmatprep.mubr.f32.mxu0 0.0
      %v912 = vand.u32 %v259, 4294901760
      %913 = vmatmul.mubr.f32.gmra.mrb[0].mxu0 %v912
      %v914 = vpop.f32.mrb[0].mxu0
      %v915 = vadd.f32 %v782, %v914
      %v916 = vpop.f32.mrb[0].mxu0
      %917 = vmatprep.mubr.f32.mxu0 0.0
      %v918 = vand.u32 %v262, 4294901760
      %919 = vmatmul.mubr.f32.gmra.mrb[0].mxu0 %v918
      %v920 = vpop.f32.mrb[0].mxu0
      %v921 = vadd.f32 %v790, %v920
      %v922 = vpop.f32.mrb[0].mxu0
      %923 = vmatprep.mubr.f32.mxu0 0.0
      %v924 = vand.u32 %v265, 4294901760
      %925 = vmatmul.mubr.f32.gmra.mrb[0].mxu0 %v924
      %v926 = vpop.f32.mrb[0].mxu0
      %v927 = vadd.f32 %v798, %v926
      %v928 = vpop.f32.mrb[0].mxu0
      %929 = vmatprep.mubr.f32.mxu0 0.0
      %v930 = vand.u32 %v268, 4294901760
      %931 = vmatmul.mubr.f32.gmra.mrb[0].mxu0 %v930
      %v932 = vpop.f32.mrb[0].mxu0
      %v933 = vadd.f32 %v806, %v932
      %v934 = vpop.f32.mrb[0].mxu0
      %935 = vmatprep.mubr.f32.mxu0 0.0
      %v936 = vand.u32 %v271, 4294901760
      %937 = vmatmul.mubr.f32.gmra.mrb[0].mxu0 %v936
      %v938 = vpop.f32.mrb[0].mxu0
      %v939 = vadd.f32 %v814, %v938
      %v940 = vpop.f32.mrb[0].mxu0
      %941 = vdwg.mxu0
      %942 = vmatprep.subr.mxu0 0.0
      %v943 = vand.u32 %v237, 4294901760
      %944 = vmatpush1.msra.mxu0 %v943
      %945 = vmatprep.subr.mxu0 0.0
      %v946 = vand.u32 %v238, 4294901760
      %947 = vmatpush1.msra.mxu0 %v946
      %948 = vmatprep.subr.mxu0 0.0
      %v949 = vand.u32 %v239, 4294901760
      %950 = vmatpush1.msra.mxu0 %v949
      %951 = vmatprep.subr.mxu0 0.0
      %v952 = vand.u32 %v240, 4294901760
      %953 = vmatpush1.msra.mxu0 %v952
      %954 = vmatprep.subr.mxu0 0.0
      %955 = vmatpush1.msra.mxu0 0.0
      %956 = vmatprep.subr.mxu0 0.0
      %957 = vmatpush1.msra.mxu0 0.0
      %958 = vmatprep.subr.mxu0 0.0
      %959 = vmatpush1.msra.mxu0 0.0
      %960 = vmatprep.subr.mxu0 0.0
      %961 = vmatpush1.msra.mxu0 0.0
      %962 = vmatprep.subr.mxu0 0.0
      %963 = vmatpush1.msra.mxu0 0.0
      %964 = vmatprep.subr.mxu0 0.0
      %965 = vmatpush1.msra.mxu0 0.0
      %966 = vmatprep.subr.mxu0 0.0
      %967 = vmatpush1.msra.mxu0 0.0
      %968 = vmatprep.subr.mxu0 0.0
      %969 = vmatpush1.msra.mxu0 0.0
      %970 = vmatprep.subr.mxu0 0.0
      %971 = vmatpush1.msra.mxu0 0.0
      %972 = vmatprep.subr.mxu0 0.0
      %973 = vmatpush1.msra.mxu0 0.0
      %974 = vmatprep.subr.mxu0 0.0
      %975 = vmatpush1.msra.mxu0 0.0
      %976 = vmatprep.subr.mxu0 0.0
      %977 = vmatpush1.msra.mxu0 0.0
      %978 = vmatprep.subr.mxu0 0.0
      %979 = vmatpush1.msra.mxu0 0.0
      %980 = vmatprep.subr.mxu0 0.0
      %981 = vmatpush1.msra.mxu0 0.0
      %982 = vmatprep.subr.mxu0 0.0
      %983 = vmatpush1.msra.mxu0 0.0
      %984 = vmatprep.subr.mxu0 0.0
      %985 = vmatpush1.msra.mxu0 0.0
      %986 = vmatprep.subr.mxu0 0.0
      %987 = vmatpush1.msra.mxu0 0.0
      %988 = vmatprep.subr.mxu0 0.0
      %989 = vmatpush1.msra.mxu0 0.0
      %990 = vmatprep.subr.mxu0 0.0
      %991 = vmatpush1.msra.mxu0 0.0
      %992 = vmatprep.subr.mxu0 0.0
      %993 = vmatpush1.msra.mxu0 0.0
      %994 = vmatprep.subr.mxu0 0.0
      %995 = vmatpush1.msra.mxu0 0.0
      %996 = vmatprep.subr.mxu0 0.0
      %997 = vmatpush1.msra.mxu0 0.0
      %998 = vmatprep.subr.mxu0 0.0
      %999 = vmatpush1.msra.mxu0 0.0
      %1000 = vmatprep.subr.mxu0 0.0
      %1001 = vmatpush1.msra.mxu0 0.0
      %1002 = vmatprep.subr.mxu0 0.0
      %1003 = vmatpush1.msra.mxu0 0.0
      %1004 = vmatprep.subr.mxu0 0.0
      %1005 = vmatpush1.msra.mxu0 0.0
      %1006 = vmatprep.subr.mxu0 0.0
      %1007 = vmatpush1.msra.mxu0 0.0
      %1008 = vmatprep.subr.mxu0 0.0
      %1009 = vmatpush1.msra.mxu0 0.0
      %1010 = vmatprep.mubr.f32.mxu0 0.0
      %v1011 = vand.u32 %v250, 4294901760
      %1012 = vmatmul.mubr.f32.gmra.mrb[0].mxu0 %v1011
      %v1013 = vpop.f32.mrb[0].mxu0
      %v1014 = vadd.f32 %v897, %v1013
      %v1015 = vpop.f32.mrb[0].mxu0
      %1016 = vmatprep.mubr.f32.mxu0 0.0
      %v1017 = vand.u32 %v253, 4294901760
      %1018 = vmatmul.mubr.f32.gmra.mrb[0].mxu0 %v1017
      %v1019 = vpop.f32.mrb[0].mxu0
      %v1020 = vadd.f32 %v903, %v1019
      %v1021 = vpop.f32.mrb[0].mxu0
      %1022 = vmatprep.mubr.f32.mxu0 0.0
      %v1023 = vand.u32 %v256, 4294901760
      %1024 = vmatmul.mubr.f32.gmra.mrb[0].mxu0 %v1023
      %v1025 = vpop.f32.mrb[0].mxu0
      %v1026 = vadd.f32 %v909, %v1025
      %v1027 = vpop.f32.mrb[0].mxu0
      %1028 = vmatprep.mubr.f32.mxu0 0.0
      %v1029 = vand.u32 %v259, 4294901760
      %1030 = vmatmul.mubr.f32.gmra.mrb[0].mxu0 %v1029
      %v1031 = vpop.f32.mrb[0].mxu0
      %v1032 = vadd.f32 %v915, %v1031
      %v1033 = vpop.f32.mrb[0].mxu0
      %1034 = vmatprep.mubr.f32.mxu0 0.0
      %v1035 = vand.u32 %v262, 4294901760
      %1036 = vmatmul.mubr.f32.gmra.mrb[0].mxu0 %v1035
      %v1037 = vpop.f32.mrb[0].mxu0
      %v1038 = vadd.f32 %v921, %v1037
      %v1039 = vpop.f32.mrb[0].mxu0
      %1040 = vmatprep.mubr.f32.mxu0 0.0
      %v1041 = vand.u32 %v265, 4294901760
      %1042 = vmatmul.mubr.f32.gmra.mrb[0].mxu0 %v1041
      %v1043 = vpop.f32.mrb[0].mxu0
      %v1044 = vadd.f32 %v927, %v1043
      %v1045 = vpop.f32.mrb[0].mxu0
      %1046 = vmatprep.mubr.f32.mxu0 0.0
      %v1047 = vand.u32 %v268, 4294901760
      %1048 = vmatmul.mubr.f32.gmra.mrb[0].mxu0 %v1047
      %v1049 = vpop.f32.mrb[0].mxu0
      %v1050 = vadd.f32 %v933, %v1049
      %v1051 = vpop.f32.mrb[0].mxu0
      %1052 = vmatprep.mubr.f32.mxu0 0.0
      %v1053 = vand.u32 %v271, 4294901760
      %1054 = vmatmul.mubr.f32.gmra.mrb[0].mxu0 %v1053
      %v1055 = vpop.f32.mrb[0].mxu0
      %v1056 = vadd.f32 %v939, %v1055
      %v1057 = vpop.f32.mrb[0].mxu0
      %1058 = vdwg.mxu0
      %v1059 = vtanh.pop %v1014
      %v1060 = vtanh.pop %v1020
      %v1061 = vtanh.pop %v1026
      %v1062 = vtanh.pop %v1032
      %v1063 = vtanh.pop %v1038
      %v1064 = vtanh.pop %v1044
      %v1065 = vtanh.pop %v1050
      %v1066 = vtanh.pop %v1056
      %v1067 = vld [vmem:[%s3] sm:$0x1]
      %v1069 = vlaneseq
      %v1070 = vshrl.u32 %v1069, 7
      %v1071 = vsub.s32 0, %v1070
      %v1072 = vrot.slane %v1067, %v1071
      %v1074 = vmul.f32 %v1059, %v1072
      %v1075 = vmul.f32 %v1060, %v1072
      %v1076 = vmul.f32 %v1061, %v1072
      %v1077 = vmul.f32 %v1062, %v1072
      %v1078 = vmul.f32 %v1063, %v1072
      %v1079 = vmul.f32 %v1064, %v1072
      %v1080 = vmul.f32 %v1065, %v1072
      %v1081 = vmul.f32 %v1066, %v1072
      %v1082 = vsel %vm248, %v1074, 0.0
      %1083 = vadd.xlane.f32.xlu0 %v1082
      %v1084 = vpop.xlane.xlu0 %1083
      %v1085 = vsel %vm248, %v1075, 0.0
      %1086 = vadd.xlane.f32.xlu0 %v1085
      %v1087 = vpop.xlane.xlu0 %1086
      %v1088 = vsel %vm248, %v1076, 0.0
      %1089 = vadd.xlane.f32.xlu0 %v1088
      %v1090 = vpop.xlane.xlu0 %1089
      %v1091 = vsel %vm248, %v1077, 0.0
      %1092 = vadd.xlane.f32.xlu0 %v1091
      %v1093 = vpop.xlane.xlu0 %1092
      %v1094 = vsel %vm248, %v1078, 0.0
      %1095 = vadd.xlane.f32.xlu0 %v1094
      %v1096 = vpop.xlane.xlu0 %1095
      %v1097 = vsel %vm248, %v1079, 0.0
      %1098 = vadd.xlane.f32.xlu0 %v1097
      %v1099 = vpop.xlane.xlu0 %1098
      %v1100 = vsel %vm248, %v1080, 0.0
      %1101 = vadd.xlane.f32.xlu0 %v1100
      %v1102 = vpop.xlane.xlu0 %1101
      %v1103 = vsel %vm248, %v1081, 0.0
      %1104 = vadd.xlane.f32.xlu0 %v1103
      %v1105 = vpop.xlane.xlu0 %1104
      %s1106 = sld [smem:[#allocation2]]
      %v1107 = vstv %s1106
      %v1108 = vadd.f32 %v1084, %v1107
      %v1109 = vadd.f32 %v1087, %v1107
      %v1110 = vadd.f32 %v1090, %v1107
      %v1111 = vadd.f32 %v1093, %v1107
      %v1112 = vadd.f32 %v1096, %v1107
      %v1113 = vadd.f32 %v1099, %v1107
      %v1114 = vadd.f32 %v1102, %v1107
      %v1115 = vadd.f32 %v1105, %v1107
      %vm1116 = vcmask 7168
      %1117 = vst.msk [vmem:[%s227] sm:$0xff] %vm1116, %v1108
      %1118 = vst.msk [vmem:[%s227 + $0x8] sm:$0xff] %vm1116, %v1109
      %1119 = vst.msk [vmem:[%s227 + $0x10] sm:$0xff] %vm1116, %v1110
      %1120 = vst.msk [vmem:[%s227 + $0x18] sm:$0xff] %vm1116, %v1111
      %1121 = vst.msk [vmem:[%s227 + $0x20] sm:$0xff] %vm1116, %v1112
      %1122 = vst.msk [vmem:[%s227 + $0x28] sm:$0xff] %vm1116, %v1113
      %1123 = vst.msk [vmem:[%s227 + $0x30] sm:$0xff] %vm1116, %v1114
      %1124 = vst.msk [vmem:[%s227 + $0x38] sm:$0xff] %vm1116, %v1115
      %s1125 = smul.u32 8, %s17
      %p1126 = scmp.lt.s32.totalorder %s1125, 15
      %s1127 = scalar_select %p1126, %s1125, 15
      %s1128 = smul.addr %s1127, 8
      %s1129 = scalar_lea.vmem %s5, %s1128
      // Predicated region
      $region41: #{tpu_custom_call.1} parent=39 // pred_check
        %p1130 = pneg %p145
      $region42: #{tpu_custom_call.1} parent=39 // pred_check_branch
        %1132 = sbr.rel (%p1130) target = $region44
      $region43: #{tpu_custom_call.1} parent=39 // pred_region
        %s1133 = smul.u32 8, %s17
      $region44: #{tpu_custom_call.1} parent=39 // pred_fallthru
        _
    $region40: #{tpu_custom_call.1} parent=5 // pred_fallthru
      _
    %p1134 = scmp.le.s32.totalorder 2, %s12
    // Predicated region
    $region45: #{tpu_custom_call.1} parent=5 // pred_check
      %p1135 = pneg %p1134
    $region46: #{tpu_custom_call.1} parent=5 // pred_check_branch
      %1137 = sbr.rel (%p1135) target = $region48
    $region47: #{tpu_custom_call.1} parent=5 // pred_region
      %s1138 = ssub.s32 %s12, 2
      // Predicated region
      $region49: #{tpu_custom_call.1} parent=47 // pred_check
        %p1139 = pneg %p151
      $region50: #{tpu_custom_call.1} parent=47 // pred_check_branch
        %1141 = sbr.rel (%p1139) target = $region52
      $region51: #{tpu_custom_call.1} parent=47 // pred_region
        %s1142 = smul.u32 8, %s18
        %p1143 = scmp.lt.s32.totalorder %s1142, 15
        %s1144 = scalar_select %p1143, %s1142, 15
        %s1145 = smul.addr %s1144, 8
        %s1146 = scalar_lea.vmem %s5, %s1145
      $region52: #{tpu_custom_call.1} parent=47 // pred_fallthru
        _
    $region48: #{tpu_custom_call.1} parent=5 // pred_fallthru
      _
  $region6: #{tpu_custom_call.1} parent=0 // loop_footer
    %s16 = sadd.s32 1, %s12
  $region7: #{tpu_custom_call.1} parent=0 // loop_footer_branch
    %11 = sbr.rel target = $region3
  $region8: #{tpu_custom_call.1} parent=0 // loop_exit
    _

</llo_original>
